<compile_context>
chip_gen: v7x
topology: tpu7x:2x2x1
jax: 0.10.0
libtpu: 0.0.40
codegen_flags: <defaults>
</compile_context>

<pallas_src>
import jax
import jax.numpy as jnp
from jax.experimental import pallas as pl
from jax.experimental.pallas import tpu as pltpu


def _acos_poly(x):
    """arccos(x) for x in [-1, 1] on the vector units.

    Abramowitz & Stegun 4.4.46: arccos(|x|) ~= sqrt(1-|x|) * P7(|x|),
    max abs error ~2e-8 on [0, 1]; reflected for negative x.
    Used because exact inverse-trig is not in the guaranteed Mosaic
    elementwise set; mul/add/sqrt/where all are.
    """
    ax = jnp.abs(x)
    p = -0.0012624911
    p = p * ax + 0.0066700901
    p = p * ax - 0.0170881256
    p = p * ax + 0.0308918810
    p = p * ax - 0.0501743046
    p = p * ax + 0.0889789874
    p = p * ax - 0.2145988016
    p = p * ax + 1.5707963050
    r = jnp.sqrt(jnp.maximum(1.0 - ax, 0.0)) * p        # arccos(|x|)
    return jnp.where(x < 0.0, jnp.pi - r, r)


def _combine_loss_kernel(pred_ref, gt_ref, loss_ref):
    # pred_ref: (6,)  f32 SMEM -> [rx, ry, rz, tx, ty, tz]
    # gt_ref:   (16,) f32 SMEM -> row-major flattened 4x4 GT transform
    # loss_ref: (1,1) f32 VMEM -> geodesic angle (the loss)

    # Splat the three Rodrigues scalars into (1,1) vregs once; all the
    # transcendental / elementwise work stays on the vector path.
    rx = jnp.full((1, 1), pred_ref[0], jnp.float32)
    ry = jnp.full((1, 1), pred_ref[1], jnp.float32)
    rz = jnp.full((1, 1), pred_ref[2], jnp.float32)

    # --- angle_axis_to_rotation_matrix (Rodrigues):  P = I + a*K + b*K^2 ---
    theta2 = rx * rx + ry * ry + rz * rz
    theta = jnp.sqrt(theta2)
    small = theta2 < 1e-6
    a = jnp.where(small, 1.0 - theta2 / 6.0,
                  jnp.sin(theta) / jnp.maximum(theta, 1e-12))
    b = jnp.where(small, 0.5 - theta2 / 24.0,
                  (1.0 - jnp.cos(theta)) / jnp.maximum(theta2, 1e-24))

    p00 = 1.0 - b * (ry * ry + rz * rz)
    p01 = -a * rz + b * rx * ry
    p02 = a * ry + b * rx * rz
    p10 = a * rz + b * rx * ry
    p11 = 1.0 - b * (rx * rx + rz * rz)
    p12 = -a * rx + b * ry * rz
    p20 = -a * ry + b * rx * rz
    p21 = a * rx + b * ry * rz
    p22 = 1.0 - b * (rx * rx + ry * ry)

    # trace(G[:3,:3].T @ P) == <G[:3,:3], P>_F.  GT elements are scalar SMEM
    # reads (row-major 4x4 -> index 4*i + j); each multiplies a (1,1) vreg.
    trace = (gt_ref[0] * p00 + gt_ref[1] * p01 + gt_ref[2] * p02 +
             gt_ref[4] * p10 + gt_ref[5] * p11 + gt_ref[6] * p12 +
             gt_ref[8] * p20 + gt_ref[9] * p21 + gt_ref[10] * p22)

    cos_angle = jnp.clip((trace - 1.0) * 0.5, -1.0, 1.0)
    loss_ref[...] = _acos_poly(cos_angle)


@jax.jit
def combine_loss(prediction, ground_truth_matrix):
    """prediction: (6,) f32, ground_truth_matrix: (4, 4) f32 -> scalar loss."""
    pred = prediction.astype(jnp.float32)                       # (6,)  - no pad
    gt = ground_truth_matrix.astype(jnp.float32).reshape(16)    # free bitcast

    angle = pl.pallas_call(
        _combine_loss_kernel,
        out_shape=jax.ShapeDtypeStruct((1, 1), jnp.float32),
        in_specs=[
            pl.BlockSpec(memory_space=pltpu.MemorySpace.SMEM),
            pl.BlockSpec(memory_space=pltpu.MemorySpace.SMEM),
        ],
        out_specs=pl.BlockSpec(memory_space=pltpu.MemorySpace.VMEM),
    )(pred, gt)

    return angle.reshape(())   # metadata-only; no extra compute launch


# ----------------------- pure-JAX reference for validation -----------------
def _angle_axis_to_matrix(r):
    theta2 = jnp.sum(r * r)
    theta = jnp.sqrt(theta2)
    K = jnp.array([[0.0, -r[2], r[1]],
                   [r[2], 0.0, -r[0]],
                   [-r[1], r[0], 0.0]], dtype=jnp.float32)
    small = theta2 < 1e-6
    a = jnp.where(small, 1.0 - theta2 / 6.0,
                  jnp.sin(theta) / jnp.maximum(theta, 1e-12))
    b = jnp.where(small, 0.5 - theta2 / 24.0,
                  (1.0 - jnp.cos(theta)) / jnp.maximum(theta2, 1e-24))
    return jnp.eye(3, dtype=jnp.float32) + a * K + b * (K @ K)


def reference_loss(prediction, ground_truth_matrix):
    P = _angle_axis_to_matrix(prediction[:3])
    G = ground_truth_matrix[:3, :3]
    R = G.T @ P
    c = jnp.clip((jnp.trace(R) - 1.0) * 0.5, -1.0, 1.0)
    return jnp.arccos(c)


if __name__ == "__main__":
    key = jax.random.PRNGKey(0)
    k1, k2, k3 = jax.random.split(key, 3)

    # prediction: [rx, ry, rz, tx, ty, tz]
    prediction = jax.random.normal(k1, (6,), dtype=jnp.float32) * 0.5

    # ground truth: proper 4x4 homogeneous transform (rotation + translation row)
    gt_rot_vec = jax.random.normal(k2, (3,), dtype=jnp.float32) * 0.5
    ground_truth_matrix = jnp.eye(4, dtype=jnp.float32)
    ground_truth_matrix = ground_truth_matrix.at[:3, :3].set(
        _angle_axis_to_matrix(gt_rot_vec))
    ground_truth_matrix = ground_truth_matrix.at[3, :3].set(
        jax.random.normal(k3, (3,), dtype=jnp.float32))

    loss = jax.block_until_ready(combine_loss(prediction, ground_truth_matrix))
    ref = reference_loss(prediction, ground_truth_matrix)

    # Tolerance covers the A&S-4.4.46 arccos polynomial (|err| <= 2e-8) plus
    # f32 EUP transcendental rounding noise.
    assert jnp.allclose(loss, ref, atol=5e-5, rtol=5e-5), (loss, ref)
    print("KERNEL_OK")
</pallas_src>

<mosaic_0001>
module attributes {stable_mosaic.version = 11 : i64} {
  func.func @_combine_loss_kernel(%arg0: memref<6xf32, #tpu.memory_space<smem>>, %arg1: memref<16xf32, #tpu.memory_space<smem>>, %arg2: memref<1x1xf32, #tpu.memory_space<vmem>>) attributes {dimension_semantics = [], scalar_prefetch = 0 : i64, scratch_operands = 0 : i64, tpu.core_type = #tpu.core_type<tc>} {
    %c0 = arith.constant 0 : index
    %0 = memref.load %arg0[%c0] : memref<6xf32, #tpu.memory_space<smem>>
    %1 = vector.broadcast %0 : f32 to vector<1x1xf32>
    %c1 = arith.constant 1 : index
    %2 = memref.load %arg0[%c1] : memref<6xf32, #tpu.memory_space<smem>>
    %3 = vector.broadcast %2 : f32 to vector<1x1xf32>
    %c2 = arith.constant 2 : index
    %4 = memref.load %arg0[%c2] : memref<6xf32, #tpu.memory_space<smem>>
    %5 = vector.broadcast %4 : f32 to vector<1x1xf32>
    %6 = arith.mulf %1, %1 : vector<1x1xf32>
    %7 = arith.mulf %3, %3 : vector<1x1xf32>
    %8 = arith.addf %6, %7 : vector<1x1xf32>
    %9 = arith.mulf %5, %5 : vector<1x1xf32>
    %10 = arith.addf %8, %9 : vector<1x1xf32>
    %11 = math.sqrt %10 : vector<1x1xf32>
    %cst = arith.constant 9.99999997E-7 : f32
    %12 = vector.broadcast %cst : f32 to vector<1x1xf32>
    %13 = arith.cmpf olt, %10, %12 : vector<1x1xf32>
    %cst_0 = arith.constant 6.000000e+00 : f32
    %14 = vector.broadcast %cst_0 : f32 to vector<1x1xf32>
    %15 = arith.divf %10, %14 : vector<1x1xf32>
    %cst_1 = arith.constant 1.000000e+00 : f32
    %16 = vector.broadcast %cst_1 : f32 to vector<1x1xf32>
    %17 = arith.subf %16, %15 : vector<1x1xf32>
    %18 = math.sin %11 : vector<1x1xf32>
    %cst_2 = arith.constant 9.99999996E-13 : f32
    %19 = vector.broadcast %cst_2 : f32 to vector<1x1xf32>
    %20 = arith.maximumf %11, %19 : vector<1x1xf32>
    %21 = arith.divf %18, %20 : vector<1x1xf32>
    %22 = arith.select %13, %17, %21 : vector<1x1xi1>, vector<1x1xf32>
    %cst_3 = arith.constant 2.400000e+01 : f32
    %23 = vector.broadcast %cst_3 : f32 to vector<1x1xf32>
    %24 = arith.divf %10, %23 : vector<1x1xf32>
    %cst_4 = arith.constant 5.000000e-01 : f32
    %25 = vector.broadcast %cst_4 : f32 to vector<1x1xf32>
    %26 = arith.subf %25, %24 : vector<1x1xf32>
    %27 = math.cos %11 : vector<1x1xf32>
    %cst_5 = arith.constant 1.000000e+00 : f32
    %28 = vector.broadcast %cst_5 : f32 to vector<1x1xf32>
    %29 = arith.subf %28, %27 : vector<1x1xf32>
    %cst_6 = arith.constant 1.000000e-24 : f32
    %30 = vector.broadcast %cst_6 : f32 to vector<1x1xf32>
    %31 = arith.maximumf %10, %30 : vector<1x1xf32>
    %32 = arith.divf %29, %31 : vector<1x1xf32>
    %33 = arith.select %13, %26, %32 : vector<1x1xi1>, vector<1x1xf32>
    %34 = arith.mulf %3, %3 : vector<1x1xf32>
    %35 = arith.mulf %5, %5 : vector<1x1xf32>
    %36 = arith.addf %34, %35 : vector<1x1xf32>
    %37 = arith.mulf %33, %36 : vector<1x1xf32>
    %cst_7 = arith.constant 1.000000e+00 : f32
    %38 = vector.broadcast %cst_7 : f32 to vector<1x1xf32>
    %39 = arith.subf %38, %37 : vector<1x1xf32>
    %cst_8 = arith.constant 0.000000e+00 : f32
    %40 = vector.broadcast %cst_8 : f32 to vector<1x1xf32>
    %41 = arith.subf %40, %22 : vector<1x1xf32>
    %42 = arith.mulf %41, %5 : vector<1x1xf32>
    %43 = arith.mulf %33, %1 : vector<1x1xf32>
    %44 = arith.mulf %43, %3 : vector<1x1xf32>
    %45 = arith.addf %42, %44 : vector<1x1xf32>
    %46 = arith.mulf %22, %3 : vector<1x1xf32>
    %47 = arith.mulf %33, %1 : vector<1x1xf32>
    %48 = arith.mulf %47, %5 : vector<1x1xf32>
    %49 = arith.addf %46, %48 : vector<1x1xf32>
    %50 = arith.mulf %22, %5 : vector<1x1xf32>
    %51 = arith.mulf %33, %1 : vector<1x1xf32>
    %52 = arith.mulf %51, %3 : vector<1x1xf32>
    %53 = arith.addf %50, %52 : vector<1x1xf32>
    %54 = arith.mulf %1, %1 : vector<1x1xf32>
    %55 = arith.mulf %5, %5 : vector<1x1xf32>
    %56 = arith.addf %54, %55 : vector<1x1xf32>
    %57 = arith.mulf %33, %56 : vector<1x1xf32>
    %cst_9 = arith.constant 1.000000e+00 : f32
    %58 = vector.broadcast %cst_9 : f32 to vector<1x1xf32>
    %59 = arith.subf %58, %57 : vector<1x1xf32>
    %cst_10 = arith.constant 0.000000e+00 : f32
    %60 = vector.broadcast %cst_10 : f32 to vector<1x1xf32>
    %61 = arith.subf %60, %22 : vector<1x1xf32>
    %62 = arith.mulf %61, %1 : vector<1x1xf32>
    %63 = arith.mulf %33, %3 : vector<1x1xf32>
    %64 = arith.mulf %63, %5 : vector<1x1xf32>
    %65 = arith.addf %62, %64 : vector<1x1xf32>
    %cst_11 = arith.constant 0.000000e+00 : f32
    %66 = vector.broadcast %cst_11 : f32 to vector<1x1xf32>
    %67 = arith.subf %66, %22 : vector<1x1xf32>
    %68 = arith.mulf %67, %3 : vector<1x1xf32>
    %69 = arith.mulf %33, %1 : vector<1x1xf32>
    %70 = arith.mulf %69, %5 : vector<1x1xf32>
    %71 = arith.addf %68, %70 : vector<1x1xf32>
    %72 = arith.mulf %22, %1 : vector<1x1xf32>
    %73 = arith.mulf %33, %3 : vector<1x1xf32>
    %74 = arith.mulf %73, %5 : vector<1x1xf32>
    %75 = arith.addf %72, %74 : vector<1x1xf32>
    %76 = arith.mulf %1, %1 : vector<1x1xf32>
    %77 = arith.mulf %3, %3 : vector<1x1xf32>
    %78 = arith.addf %76, %77 : vector<1x1xf32>
    %79 = arith.mulf %33, %78 : vector<1x1xf32>
    %cst_12 = arith.constant 1.000000e+00 : f32
    %80 = vector.broadcast %cst_12 : f32 to vector<1x1xf32>
    %81 = arith.subf %80, %79 : vector<1x1xf32>
    %c0_13 = arith.constant 0 : index
    %82 = memref.load %arg1[%c0_13] : memref<16xf32, #tpu.memory_space<smem>>
    %83 = vector.broadcast %82 : f32 to vector<1x1xf32>
    %84 = arith.mulf %83, %39 : vector<1x1xf32>
    %c1_14 = arith.constant 1 : index
    %85 = memref.load %arg1[%c1_14] : memref<16xf32, #tpu.memory_space<smem>>
    %86 = vector.broadcast %85 : f32 to vector<1x1xf32>
    %87 = arith.mulf %86, %45 : vector<1x1xf32>
    %88 = arith.addf %84, %87 : vector<1x1xf32>
    %c2_15 = arith.constant 2 : index
    %89 = memref.load %arg1[%c2_15] : memref<16xf32, #tpu.memory_space<smem>>
    %90 = vector.broadcast %89 : f32 to vector<1x1xf32>
    %91 = arith.mulf %90, %49 : vector<1x1xf32>
    %92 = arith.addf %88, %91 : vector<1x1xf32>
    %c4 = arith.constant 4 : index
    %93 = memref.load %arg1[%c4] : memref<16xf32, #tpu.memory_space<smem>>
    %94 = vector.broadcast %93 : f32 to vector<1x1xf32>
    %95 = arith.mulf %94, %53 : vector<1x1xf32>
    %96 = arith.addf %92, %95 : vector<1x1xf32>
    %c5 = arith.constant 5 : index
    %97 = memref.load %arg1[%c5] : memref<16xf32, #tpu.memory_space<smem>>
    %98 = vector.broadcast %97 : f32 to vector<1x1xf32>
    %99 = arith.mulf %98, %59 : vector<1x1xf32>
    %100 = arith.addf %96, %99 : vector<1x1xf32>
    %c6 = arith.constant 6 : index
    %101 = memref.load %arg1[%c6] : memref<16xf32, #tpu.memory_space<smem>>
    %102 = vector.broadcast %101 : f32 to vector<1x1xf32>
    %103 = arith.mulf %102, %65 : vector<1x1xf32>
    %104 = arith.addf %100, %103 : vector<1x1xf32>
    %c8 = arith.constant 8 : index
    %105 = memref.load %arg1[%c8] : memref<16xf32, #tpu.memory_space<smem>>
    %106 = vector.broadcast %105 : f32 to vector<1x1xf32>
    %107 = arith.mulf %106, %71 : vector<1x1xf32>
    %108 = arith.addf %104, %107 : vector<1x1xf32>
    %c9 = arith.constant 9 : index
    %109 = memref.load %arg1[%c9] : memref<16xf32, #tpu.memory_space<smem>>
    %110 = vector.broadcast %109 : f32 to vector<1x1xf32>
    %111 = arith.mulf %110, %75 : vector<1x1xf32>
    %112 = arith.addf %108, %111 : vector<1x1xf32>
    %c10 = arith.constant 10 : index
    %113 = memref.load %arg1[%c10] : memref<16xf32, #tpu.memory_space<smem>>
    %114 = vector.broadcast %113 : f32 to vector<1x1xf32>
    %115 = arith.mulf %114, %81 : vector<1x1xf32>
    %116 = arith.addf %112, %115 : vector<1x1xf32>
    %cst_16 = arith.constant 1.000000e+00 : f32
    %117 = vector.broadcast %cst_16 : f32 to vector<1x1xf32>
    %118 = arith.subf %116, %117 : vector<1x1xf32>
    %cst_17 = arith.constant 5.000000e-01 : f32
    %119 = vector.broadcast %cst_17 : f32 to vector<1x1xf32>
    %120 = arith.mulf %118, %119 : vector<1x1xf32>
    %cst_18 = arith.constant -1.000000e+00 : f32
    %cst_19 = arith.constant 1.000000e+00 : f32
    %121 = vector.broadcast %cst_18 : f32 to vector<1x1xf32>
    %122 = arith.maximumf %121, %120 : vector<1x1xf32>
    %123 = vector.broadcast %cst_19 : f32 to vector<1x1xf32>
    %124 = arith.minimumf %123, %122 : vector<1x1xf32>
    %125 = math.absf %124 : vector<1x1xf32>
    %cst_20 = arith.constant -0.0012624911 : f32
    %126 = vector.broadcast %cst_20 : f32 to vector<1x1xf32>
    %127 = arith.mulf %126, %125 : vector<1x1xf32>
    %cst_21 = arith.constant 6.670090e-03 : f32
    %128 = vector.broadcast %cst_21 : f32 to vector<1x1xf32>
    %129 = arith.addf %127, %128 : vector<1x1xf32>
    %130 = arith.mulf %129, %125 : vector<1x1xf32>
    %cst_22 = arith.constant 0.0170881264 : f32
    %131 = vector.broadcast %cst_22 : f32 to vector<1x1xf32>
    %132 = arith.subf %130, %131 : vector<1x1xf32>
    %133 = arith.mulf %132, %125 : vector<1x1xf32>
    %cst_23 = arith.constant 0.0308918804 : f32
    %134 = vector.broadcast %cst_23 : f32 to vector<1x1xf32>
    %135 = arith.addf %133, %134 : vector<1x1xf32>
    %136 = arith.mulf %135, %125 : vector<1x1xf32>
    %cst_24 = arith.constant 0.0501743034 : f32
    %137 = vector.broadcast %cst_24 : f32 to vector<1x1xf32>
    %138 = arith.subf %136, %137 : vector<1x1xf32>
    %139 = arith.mulf %138, %125 : vector<1x1xf32>
    %cst_25 = arith.constant 0.0889789909 : f32
    %140 = vector.broadcast %cst_25 : f32 to vector<1x1xf32>
    %141 = arith.addf %139, %140 : vector<1x1xf32>
    %142 = arith.mulf %141, %125 : vector<1x1xf32>
    %cst_26 = arith.constant 0.214598805 : f32
    %143 = vector.broadcast %cst_26 : f32 to vector<1x1xf32>
    %144 = arith.subf %142, %143 : vector<1x1xf32>
    %145 = arith.mulf %144, %125 : vector<1x1xf32>
    %cst_27 = arith.constant 1.57079625 : f32
    %146 = vector.broadcast %cst_27 : f32 to vector<1x1xf32>
    %147 = arith.addf %145, %146 : vector<1x1xf32>
    %cst_28 = arith.constant 1.000000e+00 : f32
    %148 = vector.broadcast %cst_28 : f32 to vector<1x1xf32>
    %149 = arith.subf %148, %125 : vector<1x1xf32>
    %cst_29 = arith.constant 0.000000e+00 : f32
    %150 = vector.broadcast %cst_29 : f32 to vector<1x1xf32>
    %151 = arith.maximumf %149, %150 : vector<1x1xf32>
    %152 = math.sqrt %151 : vector<1x1xf32>
    %153 = arith.mulf %152, %147 : vector<1x1xf32>
    %cst_30 = arith.constant 0.000000e+00 : f32
    %154 = vector.broadcast %cst_30 : f32 to vector<1x1xf32>
    %155 = arith.cmpf olt, %124, %154 : vector<1x1xf32>
    %cst_31 = arith.constant 3.14159274 : f32
    %156 = vector.broadcast %cst_31 : f32 to vector<1x1xf32>
    %157 = arith.subf %156, %153 : vector<1x1xf32>
    %158 = arith.select %155, %157, %153 : vector<1x1xi1>, vector<1x1xf32>
    %c0_32 = arith.constant 0 : index
    %c0_33 = arith.constant 0 : index
    %159 = vector.load %arg2[%c0_32, %c0_33] : memref<1x1xf32, #tpu.memory_space<vmem>>, vector<1x1xf32>
    tpu.vector_store %arg2[%c0_32, %c0_33], %158 {strides = array<i32>} : memref<1x1xf32, #tpu.memory_space<vmem>>, vector<1x1xf32>,
    return
  }
}

</mosaic_0001>

<llo_original>
// kernel: combine_loss.1
$region0: #{combine_loss.1}
  #allocation0 [shape = 'u32[]', space=smem, size = 0x4, offset = 0x4, fixed_abs, tag = 'smem constant byte address 0x4 - core index']
  #allocation1 [shape = 'u32[144,128]{1,0:T(1,128)}', space=vmem, size = 0x12000, scoped, tag = 'internal scratch']
  %s0 = inlined_call_operand.vmem [shape: f32[6], index: 0, kind: input, shape index: {}]
  %s1 = inlined_call_operand.vmem [shape: f32[16], index: 1, kind: input, shape index: {}]
  %s2 = inlined_call_operand.hbm [shape: f32[1,1], index: 2, kind: output, shape index: {}]
  %s3 = sld [smem:[#allocation0]]
  $region26: #{combine_loss.1} parent=0
    _
  %s5 = ssub.s32 1, %s3
  %s6 = scalar_select 0, %s5, %s3
  $region1: #{combine_loss.1} parent=0
    #allocation2 [shape = 'u8[512]{0}', space=smem, size = 0x200, scoped, tag = 'input window, operand 0, single buffered']
    #allocation3 [shape = 's32[1]{0}', space=sflag, size = 0x4, scoped, tag = 'scoped memory for combine_loss.1']
    #allocation4 [shape = 's32[1]{0}', space=sflag, size = 0x4, scoped, tag = 'scoped memory for combine_loss.1']
    #allocation5 [shape = 'u8[512]{0}', space=smem, size = 0x200, scoped, tag = 'input window, operand 1, single buffered']
    #allocation6 [shape = 's32[1]{0}', space=sflag, size = 0x4, scoped, tag = 'scoped memory for combine_loss.1']
    #allocation7 [shape = 'u8[512]{0}', space=vmem, size = 0x400, scoped, tag = 'output window, operand 0, single buffered']
    %7 = vsyncpa [#allocation4], 0
    %8 = vsyncpa [#allocation6], 0
    %9 = vsyncpa [#allocation3], 0
    // Predicated region
    $region2: #{combine_loss.1} parent=1 // pred_check
      _
    $region3: #{combine_loss.1} parent=1 // pred_check_branch
      %11 = sbr.rel (0) target = $region5
    $region4: #{combine_loss.1} parent=1 // pred_region
      %s13 = ssub.s32 16, 16
      %14 = vsyncadd [#allocation4], %s13
      %s16 = sshll.u32 %s0, 4
      %s17 = int_to_ptr.vmem [resolvable:$true] %s16
      %19 = dma.vmem_to_smem %s17, 16, [#allocation2], [#allocation4]
    $region5: #{combine_loss.1} parent=1 // pred_fallthru
      _
    // Predicated region
    $region6: #{combine_loss.1} parent=1 // pred_check
      _
    $region7: #{combine_loss.1} parent=1 // pred_check_branch
      %21 = sbr.rel (0) target = $region9
    $region8: #{combine_loss.1} parent=1 // pred_region
      %s23 = ssub.s32 16, 16
      %24 = vsyncadd [#allocation6], %s23
      %s26 = sshll.u32 %s1, 4
      %s27 = int_to_ptr.vmem [resolvable:$true] %s26
      %29 = dma.vmem_to_smem %s27, 16, [#allocation5], [#allocation6]
    $region9: #{combine_loss.1} parent=1 // pred_fallthru
      _
    // Predicated region
    $region10: #{combine_loss.1} parent=1 // pred_check
      _
    $region11: #{combine_loss.1} parent=1 // pred_check_branch
      %31 = sbr.rel (0) target = $region13
    $region12: #{combine_loss.1} parent=1 // pred_region
      %32 = dma.done [#allocation4], 16
    $region13: #{combine_loss.1} parent=1 // pred_fallthru
      _
    // Predicated region
    $region14: #{combine_loss.1} parent=1 // pred_check
      _
    $region15: #{combine_loss.1} parent=1 // pred_check_branch
      %34 = sbr.rel (0) target = $region17
    $region16: #{combine_loss.1} parent=1 // pred_region
      %35 = dma.done [#allocation6], 16
    $region17: #{combine_loss.1} parent=1 // pred_fallthru
      _
    %36 = sfence
    %s37 = sld [smem:[#allocation2]]
    %v38 = vstv %s37
    %s39 = sld [smem:[#allocation2 + $0x1]]
    %v40 = vstv %s39
    %s41 = sld [smem:[#allocation2 + $0x2]]
    %v42 = vstv %s41
    %v43 = vmul.f32 %v38, %v38
    %v44 = vmul.f32 %v40, %v40
    %v45 = vadd.f32 %v43, %v44
    %v46 = vmul.f32 %v42, %v42
    %v47 = vadd.f32 %v45, %v46
    %v48 = vrsqrt.pop %v47
    %v49 = vmul.f32 %v47, %v48
    %vm50 = vcmp.eq.f32.partialorder %v47, inf
    %v51 = vsel %vm50, %v47, %v49
    %vm52 = vcmp.eq.f32.partialorder %v47, 0.0
    %v53 = vand.u32 %v47, 2147483648
    %v54 = vsel %vm52, %v53, %v51
    %vm55 = vcmp.lt.f32.partialorder %v47, 1e-06
    %v56 = vrcp.pop 6.0
    %v57 = vmul.f32 %v47, %v56
    %v58 = vsub.f32 1.0, %v57
    %v59 = vand.u32 2147483647, %v54
    %vm60 = vcmp.le.f32.partialorder %v59, 0.7853982
    %vm61 = vcmp.lt.s32.totalorder %v54, 0
    %v62 = vand.u32 %v54, 2139095040
    %v63 = vshrl.u32 %v62, 23
    %v64 = vsub.s32 %v63, 127
    %v65 = vand.u32 2147483647, %v54
    %v66 = vand.u32 %v65, 8388607
    %v67 = vor.u32 %v66, 8388608
    %v68 = vsub.s32 0, %v67
    %v69 = vadd.s32 %v64, 1
    %vm70 = vcmp.gt.s32.totalorder %v69, 0
    %v71 = vsel %vm70, %v69, 0
    %v72 = vshrl.u32 %v71, 5
    %v73 = vand.u32 %v71, 31
    %v74 = vsub.s32 32, %v73
    %v75 = vshrl.u32 683565275, %v74
    %v76 = vshll.u32 683565275, %v73
    %v77 = vshrl.u32 2475754826, %v74
    %v78 = vor.u32 %v76, %v77
    %v79 = vshll.u32 2475754826, %v73
    %v80 = vshrl.u32 2131351028, %v74
    %v81 = vor.u32 %v79, %v80
    %v82 = vshll.u32 2131351028, %v73
    %v83 = vshrl.u32 2102212464, %v74
    %v84 = vor.u32 %v82, %v83
    %v85 = vshll.u32 2102212464, %v73
    %v86 = vshrl.u32 920167782, %v74
    %v87 = vor.u32 %v85, %v86
    %v88 = vshll.u32 920167782, %v73
    %v89 = vshrl.u32 1326507024, %v74
    %v90 = vor.u32 %v88, %v89
    %vm91 = vcmp.lt.s32.totalorder %v72, 1
    %vm92 = vcmp.lt.s32.totalorder %v72, 2
    %vm93 = vcmp.lt.s32.totalorder %v72, 3
    %vm94 = vcmp.lt.s32.totalorder %v72, 4
    %v95 = vsel %vm91, %v75, %v78
    %v96 = vsel %vm94, %v84, 2102212464
    %v97 = vsel %vm93, %v81, %v96
    %v98 = vsel %vm92, %v95, %v97
    %v99 = vsel %vm91, %v78, %v81
    %v100 = vsel %vm94, %v87, 920167782
    %v101 = vsel %vm93, %v84, %v100
    %v102 = vsel %vm92, %v99, %v101
    %v103 = vsel %vm91, %v81, %v84
    %v104 = vsel %vm94, %v90, 1326507024
    %v105 = vsel %vm93, %v87, %v104
    %v106 = vsel %vm92, %v103, %v105
    %v107 = vshll.u32 %v67, 8
    %v108 = vmul.u32.u64.compose %v107, %v106
    %v109 = vextract.low.u32 %v108
    %v110 = vextract.high.u32 %v108
    %v111 = vmul.u32.u64.compose %v107, %v102
    %v112 = vextract.low.u32 %v111
    %v113 = vextract.high.u32 %v111
    %v114 = vmul.u32 %v107, %v98
    %v115 = vadd.s32 %v110, %v112
    %vm116 = vc.u32 %v110, %v112
    %v117 = vadd.s32 %v113, 1
    %v118 = vsel %vm116, %v117, %v113
    %v119 = vadd.s32 %v114, %v118
    %v120 = vadd.s32 %v119, 536870912
    %v121 = vshrl.u32 %v120, 30
    %v122 = vshll.u32 %v121, 30
    %v123 = vsub.s32 %v119, %v122
    %vm124 = vcmp.lt.s32.totalorder %v123, 0
    %v125 = vsub.s32 0, %v123
    %v126 = vsel %vm124, %v125, %v123
    %v127 = vclz %v126
    %v128 = vsub.s32 %v127, 2
    %vm129 = vcmp.gt.s32.totalorder 0, %v128
    %v130 = vsel %vm129, 0, %v128
    %v131 = vsub.s32 32, %v130
    %v132 = vshll.u32 %v123, %v130
    %v133 = vshrl.u32 %v115, %v131
    %v134 = vor.u32 %v132, %v133
    %v135 = vsub.s32 4294967266, %v130
    %v136 = vadd.s32 %v135, 127
    %v137 = vshll.u32 %v136, 23
    %v138 = vor.u32 4788187, %v137
    %v139 = vand.u32 2147483647, %v138
    %v141 = vcvt.s32.f32 %v134
    %v142 = vmul.f32 %v141, %v139
    %v143 = vxor.u32 %v142, 2147483648
    %v144 = vsel %vm61, %v143, %v142
    %v145 = vsub.s32 4, %v121
    %v146 = vsel %vm61, %v145, %v121
    %v147 = vsel %vm60, %v54, %v144
    %v148 = vsel %vm60, 0, %v146
    %v149 = vcosq.f32.pop %v147
    %v150 = vsinq.f32.pop %v147
    %vm151 = vweird.f32 %v54
    %v152 = vadd.s32 %v148, 3
    %v153 = vand.u32 %v152, 3
    %vm154 = vcmp.lt.s32.totalorder %v153, 2
    %vm155 = vcmp.eq.s32.totalorder %v153, 0
    %v156 = vxor.u32 %v150, 2147483648
    %v157 = vsel %vm155, %v149, %v156
    %vm158 = vcmp.eq.s32.totalorder %v153, 2
    %v159 = vxor.u32 %v149, 2147483648
    %v160 = vsel %vm158, %v159, %v150
    %v161 = vsel %vm154, %v157, %v160
    %v162 = vsel %vm151, nan, %v161
    %v163 = vmax.f32 %v54, 1e-12
    %v164 = vrcp.pop %v163
    %v165 = vmul.f32 %v162, %v164
    %v166 = vsel %vm55, %v58, %v165
    %v167 = vrcp.pop 24.0
    %v168 = vmul.f32 %v47, %v167
    %v169 = vsub.f32 0.5, %v168
    %v170 = vand.u32 2147483647, %v54
    %vm171 = vcmp.le.f32.partialorder %v170, 0.7853982
    %vm172 = vcmp.lt.s32.totalorder %v54, 0
    %v173 = vand.u32 %v54, 2139095040
    %v174 = vshrl.u32 %v173, 23
    %v175 = vsub.s32 %v174, 127
    %v176 = vand.u32 2147483647, %v54
    %v177 = vand.u32 %v176, 8388607
    %v178 = vor.u32 %v177, 8388608
    %v179 = vsub.s32 0, %v178
    %v180 = vadd.s32 %v175, 1
    %vm181 = vcmp.gt.s32.totalorder %v180, 0
    %v182 = vsel %vm181, %v180, 0
    %v183 = vshrl.u32 %v182, 5
    %v184 = vand.u32 %v182, 31
    %v185 = vsub.s32 32, %v184
    %v186 = vshrl.u32 683565275, %v185
    %v187 = vshll.u32 683565275, %v184
    %v188 = vshrl.u32 2475754826, %v185
    %v189 = vor.u32 %v187, %v188
    %v190 = vshll.u32 2475754826, %v184
    %v191 = vshrl.u32 2131351028, %v185
    %v192 = vor.u32 %v190, %v191
    %v193 = vshll.u32 2131351028, %v184
    %v194 = vshrl.u32 2102212464, %v185
    %v195 = vor.u32 %v193, %v194
    %v196 = vshll.u32 2102212464, %v184
    %v197 = vshrl.u32 920167782, %v185
    %v198 = vor.u32 %v196, %v197
    %v199 = vshll.u32 920167782, %v184
    %v200 = vshrl.u32 1326507024, %v185
    %v201 = vor.u32 %v199, %v200
    %vm202 = vcmp.lt.s32.totalorder %v183, 1
    %vm203 = vcmp.lt.s32.totalorder %v183, 2
    %vm204 = vcmp.lt.s32.totalorder %v183, 3
    %vm205 = vcmp.lt.s32.totalorder %v183, 4
    %v206 = vsel %vm202, %v186, %v189
    %v207 = vsel %vm205, %v195, 2102212464
    %v208 = vsel %vm204, %v192, %v207
    %v209 = vsel %vm203, %v206, %v208
    %v210 = vsel %vm202, %v189, %v192
    %v211 = vsel %vm205, %v198, 920167782
    %v212 = vsel %vm204, %v195, %v211
    %v213 = vsel %vm203, %v210, %v212
    %v214 = vsel %vm202, %v192, %v195
    %v215 = vsel %vm205, %v201, 1326507024
    %v216 = vsel %vm204, %v198, %v215
    %v217 = vsel %vm203, %v214, %v216
    %v218 = vshll.u32 %v178, 8
    %v219 = vmul.u32.u64.compose %v218, %v217
    %v220 = vextract.low.u32 %v219
    %v221 = vextract.high.u32 %v219
    %v222 = vmul.u32.u64.compose %v218, %v213
    %v223 = vextract.low.u32 %v222
    %v224 = vextract.high.u32 %v222
    %v225 = vmul.u32 %v218, %v209
    %v226 = vadd.s32 %v221, %v223
    %vm227 = vc.u32 %v221, %v223
    %v228 = vadd.s32 %v224, 1
    %v229 = vsel %vm227, %v228, %v224
    %v230 = vadd.s32 %v225, %v229
    %v231 = vadd.s32 %v230, 536870912
    %v232 = vshrl.u32 %v231, 30
    %v233 = vshll.u32 %v232, 30
    %v234 = vsub.s32 %v230, %v233
    %vm235 = vcmp.lt.s32.totalorder %v234, 0
    %v236 = vsub.s32 0, %v234
    %v237 = vsel %vm235, %v236, %v234
    %v238 = vclz %v237
    %v239 = vsub.s32 %v238, 2
    %vm240 = vcmp.gt.s32.totalorder 0, %v239
    %v241 = vsel %vm240, 0, %v239
    %v242 = vsub.s32 32, %v241
    %v243 = vshll.u32 %v234, %v241
    %v244 = vshrl.u32 %v226, %v242
    %v245 = vor.u32 %v243, %v244
    %v246 = vsub.s32 4294967266, %v241
    %v247 = vadd.s32 %v246, 127
    %v248 = vshll.u32 %v247, 23
    %v249 = vor.u32 4788187, %v248
    %v250 = vand.u32 2147483647, %v249
    %v252 = vcvt.s32.f32 %v245
    %v253 = vmul.f32 %v252, %v250
    %v254 = vxor.u32 %v253, 2147483648
    %v255 = vsel %vm172, %v254, %v253
    %v256 = vsub.s32 4, %v232
    %v257 = vsel %vm172, %v256, %v232
    %v258 = vsel %vm171, %v54, %v255
    %v259 = vsel %vm171, 0, %v257
    %v260 = vcosq.f32.pop %v258
    %v261 = vsinq.f32.pop %v258
    %vm262 = vweird.f32 %v54
    %v263 = vand.u32 %v259, 3
    %vm264 = vcmp.lt.s32.totalorder %v263, 2
    %vm265 = vcmp.eq.s32.totalorder %v263, 0
    %v266 = vxor.u32 %v261, 2147483648
    %v267 = vsel %vm265, %v260, %v266
    %vm268 = vcmp.eq.s32.totalorder %v263, 2
    %v269 = vxor.u32 %v260, 2147483648
    %v270 = vsel %vm268, %v269, %v261
    %v271 = vsel %vm264, %v267, %v270
    %v272 = vsel %vm262, nan, %v271
    %v273 = vsub.f32 1.0, %v272
    %v274 = vmax.f32 %v47, 1e-24
    %v275 = vrcp.pop %v274
    %v276 = vmul.f32 %v273, %v275
    %v277 = vsel %vm55, %v169, %v276
    %v278 = vadd.f32 %v44, %v46
    %v279 = vmul.f32 %v277, %v278
    %v280 = vsub.f32 1.0, %v279
    %v281 = vsub.f32 0.0, %v166
    %v282 = vmul.f32 %v281, %v42
    %v283 = vmul.f32 %v277, %v38
    %v284 = vmul.f32 %v283, %v40
    %v285 = vadd.f32 %v282, %v284
    %v286 = vmul.f32 %v166, %v40
    %v287 = vmul.f32 %v283, %v42
    %v288 = vadd.f32 %v286, %v287
    %v289 = vmul.f32 %v166, %v42
    %v290 = vadd.f32 %v289, %v284
    %v291 = vadd.f32 %v43, %v46
    %v292 = vmul.f32 %v277, %v291
    %v293 = vsub.f32 1.0, %v292
    %v294 = vmul.f32 %v281, %v38
    %v295 = vmul.f32 %v277, %v40
    %v296 = vmul.f32 %v295, %v42
    %v297 = vadd.f32 %v294, %v296
    %v298 = vmul.f32 %v281, %v40
    %v299 = vadd.f32 %v298, %v287
    %v300 = vmul.f32 %v166, %v38
    %v301 = vadd.f32 %v300, %v296
    %v302 = vmul.f32 %v277, %v45
    %v303 = vsub.f32 1.0, %v302
    %s304 = sld [smem:[#allocation5]]
    %v305 = vstv %s304
    %v306 = vmul.f32 %v305, %v280
    %s307 = sld [smem:[#allocation5 + $0x1]]
    %v308 = vstv %s307
    %v309 = vmul.f32 %v308, %v285
    %v310 = vadd.f32 %v306, %v309
    %s311 = sld [smem:[#allocation5 + $0x2]]
    %v312 = vstv %s311
    %v313 = vmul.f32 %v312, %v288
    %v314 = vadd.f32 %v310, %v313
    %s315 = sld [smem:[#allocation5 + $0x4]]
    %v316 = vstv %s315
    %v317 = vmul.f32 %v316, %v290
    %v318 = vadd.f32 %v314, %v317
    %s319 = sld [smem:[#allocation5 + $0x5]]
    %v320 = vstv %s319
    %v321 = vmul.f32 %v320, %v293
    %v322 = vadd.f32 %v318, %v321
    %s323 = sld [smem:[#allocation5 + $0x6]]
    %v324 = vstv %s323
    %v325 = vmul.f32 %v324, %v297
    %v326 = vadd.f32 %v322, %v325
    %s327 = sld [smem:[#allocation5 + $0x8]]
    %v328 = vstv %s327
    %v329 = vmul.f32 %v328, %v299
    %v330 = vadd.f32 %v326, %v329
    %s331 = sld [smem:[#allocation5 + $0x9]]
    %v332 = vstv %s331
    %v333 = vmul.f32 %v332, %v301
    %v334 = vadd.f32 %v330, %v333
    %s335 = sld [smem:[#allocation5 + $0xa]]
    %v336 = vstv %s335
    %v337 = vmul.f32 %v336, %v303
    %v338 = vadd.f32 %v334, %v337
    %v339 = vsub.f32 %v338, 1.0
    %v340 = vmul.f32 %v339, 0.5
    %v341 = vmax.f32 %v340, -1.0
    %v342 = vmin.f32 %v341, 1.0
    %v343 = vand.u32 2147483647, %v342
    %v344 = vmul.f32 %v343, -0.0012624911
    %v345 = vadd.f32 %v344, 0.00667009
    %v346 = vmul.f32 %v345, %v343
    %v347 = vsub.f32 %v346, 0.017088126
    %v348 = vmul.f32 %v347, %v343
    %v349 = vadd.f32 %v348, 0.03089188
    %v350 = vmul.f32 %v349, %v343
    %v351 = vsub.f32 %v350, 0.050174303
    %v352 = vmul.f32 %v351, %v343
    %v353 = vadd.f32 %v352, 0.08897899
    %v354 = vmul.f32 %v353, %v343
    %v355 = vsub.f32 %v354, 0.2145988
    %v356 = vmul.f32 %v355, %v343
    %v357 = vadd.f32 %v356, 1.5707963
    %v358 = vsub.f32 1.0, %v343
    %v359 = vmax.f32 %v358, 0.0
    %v360 = vrsqrt.pop %v359
    %v361 = vmul.f32 %v359, %v360
    %vm362 = vcmp.eq.f32.partialorder %v359, inf
    %v363 = vsel %vm362, %v359, %v361
    %vm364 = vcmp.eq.f32.partialorder %v359, 0.0
    %v365 = vand.u32 %v359, 2147483648
    %v366 = vsel %vm364, %v365, %v363
    %v367 = vmul.f32 %v366, %v357
    %vm368 = vcmp.lt.f32.partialorder %v342, 0.0
    %v369 = vsub.f32 3.1415927, %v367
    %v370 = vsel %vm368, %v369, %v367
    %vm371 = vcmask 0
    %372 = vst.msk [vmem:[#allocation7] sm:$0x1] %vm371, %v370
    // Predicated region
    $region18: #{combine_loss.1} parent=1 // pred_check
      _
    $region19: #{combine_loss.1} parent=1 // pred_check_branch
      %374 = sbr.rel (0) target = $region21
    $region20: #{combine_loss.1} parent=1 // pred_region
      %s376 = ssub.s32 16, 16
      %377 = vsyncadd [#allocation3], %s376
      %s379 = sshll.u32 [#allocation7], 4
      %s380 = int_to_ptr.vmem [resolvable:$true] %s379
      %382 = dma.vmem_to_hbm [thread:$0]  %s380, 16, %s2, [#allocation3]
    $region21: #{combine_loss.1} parent=1 // pred_fallthru
      _
    // Predicated region
    $region22: #{combine_loss.1} parent=1 // pred_check
      _
    $region23: #{combine_loss.1} parent=1 // pred_check_branch
      %384 = sbr.rel (0) target = $region25
    $region24: #{combine_loss.1} parent=1 // pred_region
      %385 = dma.done [#allocation3], 16
    $region25: #{combine_loss.1} parent=1 // pred_fallthru
      _
    %386 = vsyncpa [#allocation3], 1
    %387 = vsyncpa [#allocation4], 1
    %388 = vsyncpa [#allocation6], 1

</llo_original>
